<compile_context>
chip_gen: v7x
topology: tpu7x:2x2x1
jax: 0.10.0
libtpu: 0.0.40
codegen_flags: <defaults>
</compile_context>

<pallas_src>
import jax
import jax.numpy as jnp
from jax.experimental import pallas as pl
from jax.experimental.pallas import tpu as pltpu  # noqa: F401  (kept for parity / future use)


def _noop_kernel(x_hbm_ref, o_hbm_ref):
    # Identity with the input aliased to the output: the output HBM buffer
    # already holds the input bytes, so the body is intentionally empty —
    # no DMA, no vector loads/stores, zero kernel-side traffic.
    del x_hbm_ref, o_hbm_ref


def noop(x: jax.Array) -> jax.Array:
    """Pallas kernel reproducing NoOp.forward(input) -> input."""
    return pl.pallas_call(
        _noop_kernel,
        out_shape=jax.ShapeDtypeStruct(x.shape, x.dtype),
        # Raw HBM refs in and out; no automatic HBM<->VMEM pipelining.
        in_specs=[pl.BlockSpec(memory_space=pl.ANY)],
        out_specs=pl.BlockSpec(memory_space=pl.ANY),
        # Alias input 0 -> output 0: zero-copy when donated; XLA inserts the
        # single required copy when the caller keeps the input alive.
        input_output_aliases={0: 0},
    )(x)


if __name__ == "__main__":
    key = jax.random.PRNGKey(0)
    x = jax.random.normal(key, (2, 4, 16, 16), dtype=jnp.float32)

    y = noop(x)
    jax.block_until_ready(y)

    assert y.shape == x.shape, (y.shape, x.shape)
    assert y.dtype == x.dtype, (y.dtype, x.dtype)
    assert bool(jnp.array_equal(y, x)), "identity kernel mismatch"

    print("KERNEL_OK")
</pallas_src>

<mosaic_0001>
module attributes {stable_mosaic.version = 11 : i64} {
  func.func @_noop_kernel(%arg0: memref<2x4x16x16xf32, #tpu.memory_space<any>>, %arg1: memref<2x4x16x16xf32, #tpu.memory_space<any>>) attributes {dimension_semantics = [], scalar_prefetch = 0 : i64, scratch_operands = 0 : i64, tpu.core_type = #tpu.core_type<tc>} {
    return
  }
}

</mosaic_0001>

<llo_original>
// kernel: tpu_custom_call.1
$region0: #{tpu_custom_call.1}
  #allocation0 [shape = 'u32[]', space=smem, size = 0x4, offset = 0x4, fixed_abs, tag = 'smem constant byte address 0x4 - core index']
  #allocation1 [shape = 'u32[144,128]{1,0:T(1,128)}', space=vmem, size = 0x12000, scoped, tag = 'internal scratch']
  %s0 = inlined_call_operand.hbm [shape: f32[2,4,16,16], index: 0, kind: input, shape index: {}, may-alias: {0,1}]
  %s1 = inlined_call_operand.hbm [shape: f32[2,4,16,16], index: 1, kind: output, shape index: {}, may-alias: {0,1}]
  %s2 = sld [smem:[#allocation0]]
  $region2: #{tpu_custom_call.1} parent=0
    _
  %s4 = ssub.s32 1, %s2
  %s5 = scalar_select 0, %s4, %s2

</llo_original>
